<compile_context>
chip_gen: v7x
topology: tpu7x:2x2x1
jax: 0.10.0
libtpu: 0.0.40
codegen_flags: <defaults>
</compile_context>

<pallas_src>
import jax
import jax.numpy as jnp
from jax.experimental import pallas as pl
from jax.experimental.pallas import tpu as pltpu


# ----------------------------- Pallas kernel ------------------------------ #
def _heads_kernel(x_ref, wc_ref, bc_ref, wl_ref, bl_ref, cls_ref, loc_ref):
    # x_ref  : (Cin, tcol)        pixels: channels on sublanes, spatial on lanes
    # wc_ref : (cls_pad, Cin)     folded cls weight (output-major)
    # bc_ref : (cls_pad, 1)       folded cls bias
    # wl_ref : (loc_pad, Cin)     folded loc weight
    # bl_ref : (loc_pad, 1)       folded loc bias
    # cls_ref: (cls_pad, tcol)    cls output tile (lane-dense stores)
    # loc_ref: (loc_pad, tcol)    loc output tile (lane-dense stores)
    x = x_ref[...]
    yc = jnp.dot(wc_ref[...], x, preferred_element_type=jnp.float32)
    yl = jnp.dot(wl_ref[...], x, preferred_element_type=jnp.float32)
    cls_ref[...] = (yc + bc_ref[...]).astype(cls_ref.dtype)
    loc_ref[...] = (yl + bl_ref[...]).astype(loc_ref.dtype)


# -------------------------- weight folding (once) ------------------------- #
def fold_params(params):
    """Fold the purely-affine module into two tiny per-pixel affine maps.

    Call this ONCE when weights are static and reuse the result for every
    inference call (hoists O(Cin*256*1280) fold FLOPs out of the hot path)."""
    (w1, b1, w2, b2, w3, b3, ws, bs, wc, bc, wl, bl) = params
    w_eff = w1 @ w2 @ w3 + ws                       # (Cin, 1024)
    b_eff = (b1 @ w2 + b2) @ w3 + b3 + bs           # (1, 1024)
    w_cls = w_eff @ wc                              # (Cin, n_cls)
    b_cls = b_eff @ wc + bc                         # (1, n_cls)
    w_loc = w_eff @ wl                              # (Cin, n_loc)
    b_loc = b_eff @ wl + bl                         # (1, n_loc)

    n_cls, n_loc = wc.shape[1], wl.shape[1]
    cin = w1.shape[0]
    cls_pad = -(-n_cls // 8) * 8                    # pad each head independently
    loc_pad = -(-n_loc // 8) * 8
    wck = jnp.zeros((cls_pad, cin), jnp.float32).at[:n_cls, :].set(w_cls.T)
    bck = jnp.zeros((cls_pad, 1), jnp.float32).at[:n_cls, 0].set(b_cls[0])
    wlk = jnp.zeros((loc_pad, cin), jnp.float32).at[:n_loc, :].set(w_loc.T)
    blk = jnp.zeros((loc_pad, 1), jnp.float32).at[:n_loc, 0].set(b_loc[0])
    return dict(wck=wck, bck=bck, wlk=wlk, blk=blk,
                n_cls=n_cls, n_loc=n_loc, cls_pad=cls_pad, loc_pad=loc_pad,
                cin=cin)


# ------------------------------- forward ---------------------------------- #
def prediction_module_c(x_nchw, params=None, *, folded=None, tcol=4096,
                        out_dtype=None):
    """x_nchw: (N, C_in, H, W). Returns (y_cls, y_loc) in NCHW."""
    if folded is None:
        folded = fold_params(params)
    wck, bck = folded["wck"], folded["bck"]
    wlk, blk = folded["wlk"], folded["blk"]
    n_cls, n_loc = folded["n_cls"], folded["n_loc"]
    cls_pad, loc_pad = folded["cls_pad"], folded["loc_pad"]

    N, Cin, H, W = x_nchw.shape
    HW = H * W
    out_dtype = x_nchw.dtype if out_dtype is None else out_dtype
    x3 = x_nchw.reshape(N, Cin, HW)                 # NCHW-native, no transpose

    # -- tiny pyramid levels: lane padding + launch overhead dominate; use XLA --
    if HW < 128:
        xf = x3.astype(jnp.float32)
        y_cls = jnp.einsum('oc,nch->noh', wck, xf) + bck[None]
        y_loc = jnp.einsum('oc,nch->noh', wlk, xf) + blk[None]
        y_cls = y_cls[:, :n_cls].astype(out_dtype).reshape(N, n_cls, H, W)
        y_loc = y_loc[:, :n_loc].astype(out_dtype).reshape(N, n_loc, H, W)
        return y_cls, y_loc

    # -- spatial tiling: lane-dense columns, as large as reasonable ------------
    hw_round = -(-HW // 128) * 128                  # round HW up to lane multiple
    tcol = max(128, min(int(tcol), 8192))
    tcol = -(-tcol // 128) * 128                    # multiple of 128
    tcol = min(tcol, hw_round)
    # v7x: guarantee >=2 parallel grid points when N == 1 (feed both TCs)
    if N == 1 and hw_round <= tcol and hw_round >= 256:
        tcol = -(-(hw_round // 2) // 128) * 128
    n_col = -(-hw_round // tcol)
    hw_pad = n_col * tcol
    if hw_pad != HW:
        x3 = jnp.pad(x3, ((0, 0), (0, 0), (0, hw_pad - HW)))

    in_itemsize = jnp.dtype(x_nchw.dtype).itemsize
    out_itemsize = jnp.dtype(out_dtype).itemsize
    cost = pl.CostEstimate(
        flops=2 * N * hw_pad * Cin * (cls_pad + loc_pad),
        transcendentals=0,
        bytes_accessed=(N * Cin * hw_pad * in_itemsize
                        + N * (cls_pad + loc_pad) * hw_pad * out_itemsize
                        + (wck.size + bck.size + wlk.size + blk.size) * 4))

    y_cls, y_loc = pl.pallas_call(
        _heads_kernel,
        out_shape=(jax.ShapeDtypeStruct((N, cls_pad, hw_pad), out_dtype),
                   jax.ShapeDtypeStruct((N, loc_pad, hw_pad), out_dtype)),
        grid=(N, n_col),
        in_specs=[
            pl.BlockSpec((None, Cin, tcol), lambda n, j: (n, 0, j)),
            pl.BlockSpec((cls_pad, Cin), lambda n, j: (0, 0)),
            pl.BlockSpec((cls_pad, 1), lambda n, j: (0, 0)),
            pl.BlockSpec((loc_pad, Cin), lambda n, j: (0, 0)),
            pl.BlockSpec((loc_pad, 1), lambda n, j: (0, 0)),
        ],
        out_specs=(
            pl.BlockSpec((None, cls_pad, tcol), lambda n, j: (n, 0, j)),
            pl.BlockSpec((None, loc_pad, tcol), lambda n, j: (n, 0, j)),
        ),
        compiler_params=pltpu.CompilerParams(
            dimension_semantics=("parallel", "parallel"),
            vmem_limit_bytes=32 * 1024 * 1024),
        cost_estimate=cost,
    )(x3, wck, bck, wlk, blk)

    # strip padding only when it exists (reshape is free metadata otherwise)
    if cls_pad != n_cls or hw_pad != HW:
        y_cls = y_cls[:, :n_cls, :HW]
    if loc_pad != n_loc or hw_pad != HW:
        y_loc = y_loc[:, :n_loc, :HW]
    return (y_cls.reshape(N, n_cls, H, W),
            y_loc.reshape(N, n_loc, H, W))


# ------------------------------ test harness ------------------------------ #
def init_params(key, out_channels, boxes_per_location, num_classes):
    """Deterministic synthetic weights. 1x1 conv weight (Cout, Cin, 1, 1) is
    stored transposed as (Cin, Cout) so math is x @ W; bias is (1, Cout)."""
    ks = jax.random.split(key, 12)

    def w(k, cin, cout):
        return (jax.random.normal(k, (cin, cout), jnp.float32)
                / jnp.sqrt(jnp.float32(cin)))

    def b(k, cout):
        return jax.random.normal(k, (1, cout), jnp.float32) * 0.01

    w1, b1 = w(ks[0], out_channels, 256), b(ks[1], 256)
    w2, b2 = w(ks[2], 256, 256), b(ks[3], 256)
    w3, b3 = w(ks[4], 256, 1024), b(ks[5], 1024)
    ws, bs = w(ks[6], out_channels, 1024), b(ks[7], 1024)
    wc, bc = (w(ks[8], 1024, boxes_per_location * num_classes),
              b(ks[9], boxes_per_location * num_classes))
    wl, bl = (w(ks[10], 1024, boxes_per_location * 4),
              b(ks[11], boxes_per_location * 4))
    return (w1, b1, w2, b2, w3, b3, ws, bs, wc, bc, wl, bl)


def _reference(x_nchw, params):
    """Plain-JAX *unfused* reference of the original forward pass."""
    (w1, b1, w2, b2, w3, b3, ws, bs, wc, bc, wl, bl) = params
    N, Cin, H, W = x_nchw.shape
    x = jnp.transpose(x_nchw, (0, 2, 3, 1)).reshape(-1, Cin)
    h = ((x @ w1 + b1) @ w2 + b2) @ w3 + b3
    y = h + (x @ ws + bs)
    cls = (y @ wc + bc).reshape(N, H, W, -1).transpose(0, 3, 1, 2)
    loc = (y @ wl + bl).reshape(N, H, W, -1).transpose(0, 3, 1, 2)
    return cls, loc


if __name__ == "__main__":
    # small shapes consistent with the module
    N, out_channels, H, W = 2, 4, 16, 16
    boxes_per_location, num_classes = 6, 4

    key = jax.random.PRNGKey(0)
    kx, kp = jax.random.split(key)
    x = jax.random.normal(kx, (N, out_channels, H, W), jnp.float32)
    params = init_params(kp, out_channels, boxes_per_location, num_classes)

    # fold once (hoisted out of the per-inference path), then run the kernel
    folded = fold_params(params)
    y_cls, y_loc = prediction_module_c(x, folded=folded)
    jax.block_until_ready((y_cls, y_loc))

    ref_cls, ref_loc = _reference(x, params)
    assert y_cls.shape == (N, boxes_per_location * num_classes, H, W)
    assert y_loc.shape == (N, boxes_per_location * 4, H, W)
    assert jnp.allclose(y_cls, ref_cls, atol=1e-3, rtol=1e-3)
    assert jnp.allclose(y_loc, ref_loc, atol=1e-3, rtol=1e-3)

    print("KERNEL_OK")
</pallas_src>

<mosaic_0001>
module attributes {stable_mosaic.version = 11 : i64} {
  func.func @_heads_kernel(%arg0: i32, %arg1: i32, %arg2: memref<1x4x256xf32, #tpu.memory_space<vmem>>, %arg3: memref<24x4xf32, #tpu.memory_space<vmem>>, %arg4: memref<24x1xf32, #tpu.memory_space<vmem>>, %arg5: memref<24x4xf32, #tpu.memory_space<vmem>>, %arg6: memref<24x1xf32, #tpu.memory_space<vmem>>, %arg7: memref<1x24x256xf32, #tpu.memory_space<vmem>>, %arg8: memref<1x24x256xf32, #tpu.memory_space<vmem>>) attributes {dimension_semantics = [#tpu.dimension_semantics<parallel>, #tpu.dimension_semantics<parallel>], iteration_bounds = array<i64: 2, 1>, scalar_prefetch = 0 : i64, scratch_operands = 0 : i64, tpu.core_type = #tpu.core_type<tc>, window_params = [{transform_indices = @transform_0, window_bounds = array<i64: 1, 4, 256>}, {pipeline_mode = #tpu.pipeline_mode<synchronous>, transform_indices = @transform_1, window_bounds = array<i64: 24, 4>}, {pipeline_mode = #tpu.pipeline_mode<synchronous>, transform_indices = @transform_2, window_bounds = array<i64: 24, 1>}, {pipeline_mode = #tpu.pipeline_mode<synchronous>, transform_indices = @transform_3, window_bounds = array<i64: 24, 4>}, {pipeline_mode = #tpu.pipeline_mode<synchronous>, transform_indices = @transform_4, window_bounds = array<i64: 24, 1>}, {transform_indices = @transform_5, window_bounds = array<i64: 1, 24, 256>}, {transform_indices = @transform_6, window_bounds = array<i64: 1, 24, 256>}]} {
    %c0 = arith.constant 0 : index
    %c0_0 = arith.constant 0 : index
    %c0_1 = arith.constant 0 : index
    %0 = vector.load %arg2[%c0, %c0_0, %c0_1] : memref<1x4x256xf32, #tpu.memory_space<vmem>>, vector<1x4x256xf32>
    %1 = vector.shape_cast %0 : vector<1x4x256xf32> to vector<4x256xf32>
    %c0_2 = arith.constant 0 : index
    %c0_3 = arith.constant 0 : index
    %2 = vector.load %arg3[%c0_2, %c0_3] : memref<24x4xf32, #tpu.memory_space<vmem>>, vector<24x4xf32>
    %cst = arith.constant dense<0.000000e+00> : vector<24x256xf32>
    %3 = tpu.matmul %2, %1, %cst {dimension_numbers = #tpu.dot_dimension_numbers<[1], [0], [0], [1], [0, 0, 1, 1], [], []>} : vector<24x4xf32>, vector<4x256xf32>, vector<24x256xf32> -> vector<24x256xf32>
    %c0_4 = arith.constant 0 : index
    %c0_5 = arith.constant 0 : index
    %4 = vector.load %arg5[%c0_4, %c0_5] : memref<24x4xf32, #tpu.memory_space<vmem>>, vector<24x4xf32>
    %cst_6 = arith.constant dense<0.000000e+00> : vector<24x256xf32>
    %5 = tpu.matmul %4, %1, %cst_6 {dimension_numbers = #tpu.dot_dimension_numbers<[1], [0], [0], [1], [0, 0, 1, 1], [], []>} : vector<24x4xf32>, vector<4x256xf32>, vector<24x256xf32> -> vector<24x256xf32>
    %c0_7 = arith.constant 0 : index
    %c0_8 = arith.constant 0 : index
    %6 = vector.load %arg4[%c0_7, %c0_8] : memref<24x1xf32, #tpu.memory_space<vmem>>, vector<24x1xf32>
    %7 = vector.broadcast %6 : vector<24x1xf32> to vector<24x256xf32>
    %8 = arith.addf %3, %7 : vector<24x256xf32>
    %c0_9 = arith.constant 0 : index
    %c0_10 = arith.constant 0 : index
    %c0_11 = arith.constant 0 : index
    %9 = vector.load %arg7[%c0_9, %c0_10, %c0_11] : memref<1x24x256xf32, #tpu.memory_space<vmem>>, vector<1x24x256xf32>
    %10 = vector.shape_cast %9 : vector<1x24x256xf32> to vector<24x256xf32>
    %11 = vector.shape_cast %8 : vector<24x256xf32> to vector<1x24x256xf32>
    tpu.vector_store %arg7[%c0_9, %c0_10, %c0_11], %11 {strides = array<i32>} : memref<1x24x256xf32, #tpu.memory_space<vmem>>, vector<1x24x256xf32>,
    %c0_12 = arith.constant 0 : index
    %c0_13 = arith.constant 0 : index
    %12 = vector.load %arg6[%c0_12, %c0_13] : memref<24x1xf32, #tpu.memory_space<vmem>>, vector<24x1xf32>
    %13 = vector.broadcast %12 : vector<24x1xf32> to vector<24x256xf32>
    %14 = arith.addf %5, %13 : vector<24x256xf32>
    %c0_14 = arith.constant 0 : index
    %c0_15 = arith.constant 0 : index
    %c0_16 = arith.constant 0 : index
    %15 = vector.load %arg8[%c0_14, %c0_15, %c0_16] : memref<1x24x256xf32, #tpu.memory_space<vmem>>, vector<1x24x256xf32>
    %16 = vector.shape_cast %15 : vector<1x24x256xf32> to vector<24x256xf32>
    %17 = vector.shape_cast %14 : vector<24x256xf32> to vector<1x24x256xf32>
    tpu.vector_store %arg8[%c0_14, %c0_15, %c0_16], %17 {strides = array<i32>} : memref<1x24x256xf32, #tpu.memory_space<vmem>>, vector<1x24x256xf32>,
    return
  }
  func.func @transform_0(%arg0: i32, %arg1: i32) -> (i32, i32, i32) {
    %c0_i32 = arith.constant 0 : i32
    %c0_i32_0 = arith.constant 0 : i32
    return %arg0, %c0_i32, %arg1 : i32, i32, i32
  }
  func.func @transform_1(%arg0: i32, %arg1: i32) -> (i32, i32) {
    %c0_i32 = arith.constant 0 : i32
    %c0_i32_0 = arith.constant 0 : i32
    %c0_i32_1 = arith.constant 0 : i32
    return %c0_i32, %c0_i32_0 : i32, i32
  }
  func.func @transform_2(%arg0: i32, %arg1: i32) -> (i32, i32) {
    %c0_i32 = arith.constant 0 : i32
    %c0_i32_0 = arith.constant 0 : i32
    %c0_i32_1 = arith.constant 0 : i32
    return %c0_i32, %c0_i32_0 : i32, i32
  }
  func.func @transform_3(%arg0: i32, %arg1: i32) -> (i32, i32) {
    %c0_i32 = arith.constant 0 : i32
    %c0_i32_0 = arith.constant 0 : i32
    %c0_i32_1 = arith.constant 0 : i32
    return %c0_i32, %c0_i32_0 : i32, i32
  }
  func.func @transform_4(%arg0: i32, %arg1: i32) -> (i32, i32) {
    %c0_i32 = arith.constant 0 : i32
    %c0_i32_0 = arith.constant 0 : i32
    %c0_i32_1 = arith.constant 0 : i32
    return %c0_i32, %c0_i32_0 : i32, i32
  }
  func.func @transform_5(%arg0: i32, %arg1: i32) -> (i32, i32, i32) {
    %c0_i32 = arith.constant 0 : i32
    %c0_i32_0 = arith.constant 0 : i32
    return %arg0, %c0_i32, %arg1 : i32, i32, i32
  }
  func.func @transform_6(%arg0: i32, %arg1: i32) -> (i32, i32, i32) {
    %c0_i32 = arith.constant 0 : i32
    %c0_i32_0 = arith.constant 0 : i32
    return %arg0, %c0_i32, %arg1 : i32, i32, i32
  }
}

</mosaic_0001>

<llo_original>
// kernel: tpu_custom_call.1
$region0: #{tpu_custom_call.1}
  #allocation0 [shape = 'u32[]', space=smem, size = 0x4, offset = 0x4, fixed_abs, tag = 'smem constant byte address 0x4 - core index']
  #allocation1 [shape = 'u32[144,128]{1,0:T(1,128)}', space=vmem, size = 0x12000, scoped, tag = 'internal scratch']
  %s0 = inlined_call_operand.vmem [shape: f32[2,4,256], index: 0, kind: input, shape index: {}]
  %s1 = inlined_call_operand.vmem [shape: f32[24,4], index: 1, kind: input, shape index: {}]
  %s2 = inlined_call_operand.vmem [shape: f32[24,1], index: 2, kind: input, shape index: {}]
  %s3 = inlined_call_operand.vmem [shape: f32[24,4], index: 3, kind: input, shape index: {}]
  %s4 = inlined_call_operand.vmem [shape: f32[24,1], index: 4, kind: input, shape index: {}]
  %s5 = inlined_call_operand.hbm [shape: f32[2,24,256], index: 5, kind: output, shape index: {0}]
  %s6 = inlined_call_operand.hbm [shape: f32[2,24,256], index: 6, kind: output, shape index: {1}]
  %7 = xla_tuple %s5, %s6
  %s8 = sld [smem:[#allocation0]]
  $region61: #{tpu_custom_call.1} parent=0
    _
  %s10 = ssub.s32 1, %s8
  %s11 = scalar_select 0, %s10, %s8
  $region1: #{tpu_custom_call.1} parent=0
    #allocation2 [shape = 'u8[49152]{0}', space=vmem, size = 0xc000, scoped, tag = 'output window, operand 0']
    #allocation3 [shape = 's32[2]{0}', space=sflag, size = 0x8, scoped, tag = 'scoped memory for tpu_custom_call.1']
    #allocation4 [shape = 'u8[49152]{0}', space=vmem, size = 0xc000, scoped, tag = 'output window, operand 1']
    #allocation5 [shape = 's32[2]{0}', space=sflag, size = 0x8, scoped, tag = 'scoped memory for tpu_custom_call.1']
    %12 = vsyncpa [#allocation3], 0
    %s13 = scalar_lea.sflag [#allocation3], 1
    %14 = vsyncpa %s13, 0
    %15 = vsyncpa [#allocation5], 0
    %s16 = scalar_lea.sflag [#allocation5], 1
    %17 = vsyncpa %s16, 0
    loop: start=0, step=1, limit=4
    $region2: #{tpu_custom_call.1} parent=1 // loop_pre_header
      _
    $region3: #{tpu_custom_call.1} parent=1 // loop_header
      %s19 = sphi 0, %s23
      %p20 = scmp.ge.s32.totalorder %s19, 4
      %s26 = sphi 0, %s38
      %s27 = sphi 0, %s34
      %s28 = sphi 0, %s26
      %s29 = sphi 0, %s27
      %s30 = sphi 0, %s28
      %s31 = sphi 0, %s29
      %s43 = sphi 0, %s45
      %s46 = sphi 0, %s43
      %s47 = sphi 0, %s46
      %s63 = sphi 0, %s47
      %s67 = sphi 0, %s67
      %s69 = sphi 0, %s67
      %s70 = sphi 0, %s69
      %s84 = sphi 0, %s70
      %s88 = sphi 0, %s88
      %s90 = sphi 0, %s88
      %s91 = sphi 0, %s90
      %s105 = sphi 0, %s91
      %s109 = sphi 0, %s109
      %s111 = sphi 0, %s109
      %s112 = sphi 0, %s111
      %s126 = sphi 0, %s112
      %s130 = sphi 0, %s130
      %s132 = sphi 0, %s130
      %s133 = sphi 0, %s132
      %s147 = sphi 0, %s133
      %s155 = sphi 0, %s157
      %s158 = sphi 0, %s155
      %s159 = sphi 0, %s158
      %s175 = sphi 0, %s159
      %s183 = sphi 0, %s185
      %s186 = sphi 0, %s183
      %s187 = sphi 0, %s186
      %s203 = sphi 0, %s187
    $region4: #{tpu_custom_call.1} parent=1 // loop_header_branch
      %22 = sbr.rel (%p20) target = $region8
    $region5: #{tpu_custom_call.1} parent=1 // loop_body
      %s24 = ssub.s32 %s19, 1
      %s25 = ssub.s32 %s19, 2
      %s32 = sadd.s32 1, %s27
      %p33 = scmp.ge.s32.totalorder %s32, 1
      %s34 = scalar_select %p33, 0, %s32
      %s35 = sadd.s32 1, %s26
      %s36 = scalar_select %p33, %s35, %s26
      %p37 = scmp.ge.s32.totalorder %s36, 2
      %s38 = scalar_select %p37, 0, %s36
      %s39 = ssub.s32 %s26, %s38
      %s40 = ssub.s32 %s27, %s34
      %s41 = sor.u32 %s39, %s40
      %p42 = scmp.eq.s32.totalorder %s41, 0
      %s44 = sadd.s32 %s43, 1
      %s45 = scalar_select %p42, %s43, %s44
      %p48 = pneg %p42
      %p49 = scmp.eq.s32.totalorder %s19, 1
      %p50 = por %p48, %p49
      %p51 = scmp.ne.s32.totalorder %s43, %s46
      %p52 = scmp.eq.s32.totalorder %s19, 0
      %p53 = por %p51, %p52
      %p54 = scmp.ne.s32.totalorder %s43, %s46
      %p55 = scmp.eq.s32.totalorder %s24, 1
      %p56 = por %p54, %p55
      %p57 = scmp.ne.s32.totalorder %s46, %s47
      %p58 = scmp.eq.s32.totalorder %s24, 0
      %p59 = por %p57, %p58
      %p60 = scmp.ne.s32.totalorder %s46, %s47
      %p61 = scmp.eq.s32.totalorder %s25, 1
      %p62 = por %p60, %p61
      %p64 = scmp.ne.s32.totalorder %s47, %s63
      %p65 = scmp.eq.s32.totalorder %s25, 0
      %p66 = por %p64, %p65
      %s68 = sadd.s32 %s67, 1
      %p71 = scmp.eq.s32.totalorder %s19, 1
      %p72 = scmp.ne.s32.totalorder %s67, %s69
      %p73 = scmp.eq.s32.totalorder %s19, 0
      %p74 = por %p72, %p73
      %p75 = scmp.ne.s32.totalorder %s67, %s69
      %p76 = scmp.eq.s32.totalorder %s24, 1
      %p77 = por %p75, %p76
      %p78 = scmp.ne.s32.totalorder %s69, %s70
      %p79 = scmp.eq.s32.totalorder %s24, 0
      %p80 = por %p78, %p79
      %p81 = scmp.ne.s32.totalorder %s69, %s70
      %p82 = scmp.eq.s32.totalorder %s25, 1
      %p83 = por %p81, %p82
      %p85 = scmp.ne.s32.totalorder %s70, %s84
      %p86 = scmp.eq.s32.totalorder %s25, 0
      %p87 = por %p85, %p86
      %s89 = sadd.s32 %s88, 1
      %p92 = scmp.eq.s32.totalorder %s19, 1
      %p93 = scmp.ne.s32.totalorder %s88, %s90
      %p94 = scmp.eq.s32.totalorder %s19, 0
      %p95 = por %p93, %p94
      %p96 = scmp.ne.s32.totalorder %s88, %s90
      %p97 = scmp.eq.s32.totalorder %s24, 1
      %p98 = por %p96, %p97
      %p99 = scmp.ne.s32.totalorder %s90, %s91
      %p100 = scmp.eq.s32.totalorder %s24, 0
      %p101 = por %p99, %p100
      %p102 = scmp.ne.s32.totalorder %s90, %s91
      %p103 = scmp.eq.s32.totalorder %s25, 1
      %p104 = por %p102, %p103
      %p106 = scmp.ne.s32.totalorder %s91, %s105
      %p107 = scmp.eq.s32.totalorder %s25, 0
      %p108 = por %p106, %p107
      %s110 = sadd.s32 %s109, 1
      %p113 = scmp.eq.s32.totalorder %s19, 1
      %p114 = scmp.ne.s32.totalorder %s109, %s111
      %p115 = scmp.eq.s32.totalorder %s19, 0
      %p116 = por %p114, %p115
      %p117 = scmp.ne.s32.totalorder %s109, %s111
      %p118 = scmp.eq.s32.totalorder %s24, 1
      %p119 = por %p117, %p118
      %p120 = scmp.ne.s32.totalorder %s111, %s112
      %p121 = scmp.eq.s32.totalorder %s24, 0
      %p122 = por %p120, %p121
      %p123 = scmp.ne.s32.totalorder %s111, %s112
      %p124 = scmp.eq.s32.totalorder %s25, 1
      %p125 = por %p123, %p124
      %p127 = scmp.ne.s32.totalorder %s112, %s126
      %p128 = scmp.eq.s32.totalorder %s25, 0
      %p129 = por %p127, %p128
      %s131 = sadd.s32 %s130, 1
      %p134 = scmp.eq.s32.totalorder %s19, 1
      %p135 = scmp.ne.s32.totalorder %s130, %s132
      %p136 = scmp.eq.s32.totalorder %s19, 0
      %p137 = por %p135, %p136
      %p138 = scmp.ne.s32.totalorder %s130, %s132
      %p139 = scmp.eq.s32.totalorder %s24, 1
      %p140 = por %p138, %p139
      %p141 = scmp.ne.s32.totalorder %s132, %s133
      %p142 = scmp.eq.s32.totalorder %s24, 0
      %p143 = por %p141, %p142
      %p144 = scmp.ne.s32.totalorder %s132, %s133
      %p145 = scmp.eq.s32.totalorder %s25, 1
      %p146 = por %p144, %p145
      %p148 = scmp.ne.s32.totalorder %s133, %s147
      %p149 = scmp.eq.s32.totalorder %s25, 0
      %p150 = por %p148, %p149
      %s151 = ssub.s32 %s26, %s38
      %s152 = ssub.s32 %s27, %s34
      %s153 = sor.u32 %s151, %s152
      %p154 = scmp.eq.s32.totalorder %s153, 0
      %s156 = sadd.s32 %s155, 1
      %s157 = scalar_select %p154, %s155, %s156
      %p160 = pneg %p154
      %p161 = scmp.eq.s32.totalorder %s19, 1
      %p162 = por %p160, %p161
      %p163 = scmp.ne.s32.totalorder %s155, %s158
      %p164 = scmp.eq.s32.totalorder %s19, 0
      %p165 = por %p163, %p164
      %p166 = scmp.ne.s32.totalorder %s155, %s158
      %p167 = scmp.eq.s32.totalorder %s24, 1
      %p168 = por %p166, %p167
      %p169 = scmp.ne.s32.totalorder %s158, %s159
      %p170 = scmp.eq.s32.totalorder %s24, 0
      %p171 = por %p169, %p170
      %p172 = scmp.ne.s32.totalorder %s158, %s159
      %p173 = scmp.eq.s32.totalorder %s25, 1
      %p174 = por %p172, %p173
      %p176 = scmp.ne.s32.totalorder %s159, %s175
      %p177 = scmp.eq.s32.totalorder %s25, 0
      %p178 = por %p176, %p177
      %s179 = ssub.s32 %s26, %s38
      %s180 = ssub.s32 %s27, %s34
      %s181 = sor.u32 %s179, %s180
      %p182 = scmp.eq.s32.totalorder %s181, 0
      %s184 = sadd.s32 %s183, 1
      %s185 = scalar_select %p182, %s183, %s184
      %p188 = pneg %p182
      %p189 = scmp.eq.s32.totalorder %s19, 1
      %p190 = por %p188, %p189
      %p191 = scmp.ne.s32.totalorder %s183, %s186
      %p192 = scmp.eq.s32.totalorder %s19, 0
      %p193 = por %p191, %p192
      %p194 = scmp.ne.s32.totalorder %s183, %s186
      %p195 = scmp.eq.s32.totalorder %s24, 1
      %p196 = por %p194, %p195
      %p197 = scmp.ne.s32.totalorder %s186, %s187
      %p198 = scmp.eq.s32.totalorder %s24, 0
      %p199 = por %p197, %p198
      %p200 = scmp.ne.s32.totalorder %s186, %s187
      %p201 = scmp.eq.s32.totalorder %s25, 1
      %p202 = por %p200, %p201
      %p204 = scmp.ne.s32.totalorder %s187, %s203
      %p205 = scmp.eq.s32.totalorder %s25, 0
      %p206 = por %p204, %p205
      %p207 = scmp.le.s32.totalorder 1, %s19
      %p208 = scmp.lt.s32.totalorder %s19, 3
      %p209 = pnand %p207, %p208
      %p210 = pneg %p209
      // Predicated region
      $region9: #{tpu_custom_call.1} parent=5 // pred_check
        _
      $region10: #{tpu_custom_call.1} parent=5 // pred_check_branch
        %212 = sbr.rel (%p209) target = $region12
      $region11: #{tpu_custom_call.1} parent=5 // pred_region
        %s213 = ssub.s32 %s19, 1
        // Predicated region
        $region13: #{tpu_custom_call.1} parent=11 // pred_check
          %p214 = pneg %p80
        $region14: #{tpu_custom_call.1} parent=11 // pred_check_branch
          %216 = sbr.rel (%p214) target = $region16
        $region15: #{tpu_custom_call.1} parent=11 // pred_region
          _
        $region16: #{tpu_custom_call.1} parent=11 // pred_fallthru
          _
        // Predicated region
        $region17: #{tpu_custom_call.1} parent=11 // pred_check
          %p217 = pneg %p101
        $region18: #{tpu_custom_call.1} parent=11 // pred_check_branch
          %219 = sbr.rel (%p217) target = $region20
        $region19: #{tpu_custom_call.1} parent=11 // pred_region
          _
        $region20: #{tpu_custom_call.1} parent=11 // pred_fallthru
          _
        // Predicated region
        $region21: #{tpu_custom_call.1} parent=11 // pred_check
          %p220 = pneg %p122
        $region22: #{tpu_custom_call.1} parent=11 // pred_check_branch
          %222 = sbr.rel (%p220) target = $region24
        $region23: #{tpu_custom_call.1} parent=11 // pred_region
          _
        $region24: #{tpu_custom_call.1} parent=11 // pred_fallthru
          _
        // Predicated region
        $region25: #{tpu_custom_call.1} parent=11 // pred_check
          %p223 = pneg %p143
        $region26: #{tpu_custom_call.1} parent=11 // pred_check_branch
          %225 = sbr.rel (%p223) target = $region28
        $region27: #{tpu_custom_call.1} parent=11 // pred_region
          _
        $region28: #{tpu_custom_call.1} parent=11 // pred_fallthru
          _
      $region12: #{tpu_custom_call.1} parent=5 // pred_fallthru
        _
      %p226 = scmp.lt.s32.totalorder %s19, 2
      // Predicated region
      $region29: #{tpu_custom_call.1} parent=5 // pred_check
        %p227 = pneg %p226
      $region30: #{tpu_custom_call.1} parent=5 // pred_check_branch
        %229 = sbr.rel (%p227) target = $region32
      $region31: #{tpu_custom_call.1} parent=5 // pred_region
        // Predicated region
        $region33: #{tpu_custom_call.1} parent=31 // pred_check
          %p230 = pneg %p53
        $region34: #{tpu_custom_call.1} parent=31 // pred_check_branch
          %232 = sbr.rel (%p230) target = $region36
        $region35: #{tpu_custom_call.1} parent=31 // pred_region
          %s233 = smul.u32 2, %s27
          %p234 = scmp.lt.s32.totalorder %s26, 1
          %s235 = scalar_select %p234, %s26, 1
          %p236 = scmp.lt.s32.totalorder %s233, 1
          %s237 = scalar_select %p236, %s233, 1
          %s238 = smul.addr %s235, 2
          %s239 = sadd.s32 %s237, %s238
          %s240 = smul.addr %s239, 4
          %s241 = scalar_lea.vmem %s0, %s240
          %s242 = smul.u32 2, %s27
        $region36: #{tpu_custom_call.1} parent=31 // pred_fallthru
          _
      $region32: #{tpu_custom_call.1} parent=5 // pred_fallthru
        _
      %p243 = scmp.le.s32.totalorder 1, %s19
      %p244 = scmp.lt.s32.totalorder %s19, 3
      %p245 = pnand %p243, %p244
      %p246 = pneg %p245
      // Predicated region
      $region37: #{tpu_custom_call.1} parent=5 // pred_check
        _
      $region38: #{tpu_custom_call.1} parent=5 // pred_check_branch
        %248 = sbr.rel (%p245) target = $region40
      $region39: #{tpu_custom_call.1} parent=5 // pred_region
        %s249 = ssub.s32 %s19, 1
        %s250 = smul.u32 2, %s29
        %p251 = scmp.lt.s32.totalorder %s28, 1
        %s252 = scalar_select %p251, %s28, 1
        %p253 = scmp.lt.s32.totalorder %s250, 1
        %s254 = scalar_select %p253, %s250, 1
        %s255 = smul.addr %s252, 2
        %s256 = sadd.s32 %s254, %s255
        %s257 = smul.addr %s256, 4
        %s258 = scalar_lea.vmem %s0, %s257
        %p259 = pneg %p59
        %p260 = pneg %p56
        %p261 = pneg %p80
        %p262 = pneg %p77
        %p263 = pneg %p101
        %p264 = pneg %p98
        %p265 = pneg %p122
        %p266 = pneg %p119
        %p267 = pneg %p143
        %p268 = pneg %p140
        %p269 = pneg %p171
        %p270 = pneg %p168
        %s271 = sand.u32 %s158, 1
        %s272 = scalar_lea.sflag [#allocation3], %s271
        %s273 = sand.u32 %s158, 1
        %s274 = smul.addr %s273, 48
        %s275 = scalar_lea.vmem [#allocation2], %s274
        %p276 = pneg %p199
        %p277 = pneg %p196
        %s278 = sand.u32 %s186, 1
        %s279 = scalar_lea.sflag [#allocation5], %s278
        %s280 = sand.u32 %s186, 1
        %s281 = smul.addr %s280, 48
        %s282 = scalar_lea.vmem [#allocation4], %s281
        %s283 = smul.u32 2, %s29
        %p284 = scmp.lt.s32.totalorder %s28, 1
        %s285 = scalar_select %p284, %s28, 1
        %p286 = scmp.lt.s32.totalorder %s283, 1
        %s287 = scalar_select %p286, %s283, 1
        %s288 = smul.addr %s285, 2
        %s289 = sadd.s32 %s287, %s288
        %s290 = smul.addr %s289, 4
        %s291 = scalar_lea.vmem %s0, %s290
        %s292 = smul.u32 2, %s29
        %s293 = smul.u32 2, %s29
        %s294 = smul.u32 2, %s29
        %v295 = vld [vmem:[%s291] sm:$0xff]
        %v296 = vld [vmem:[%s1] sm:$0xff]
        %v297 = vld [vmem:[%s1 + $0x8] sm:$0xff]
        %v298 = vld [vmem:[%s1 + $0x10] sm:$0xff]
        %v299 = vld [vmem:[%s3] sm:$0xff]
        %v300 = vld [vmem:[%s3 + $0x8] sm:$0xff]
        %v301 = vld [vmem:[%s3 + $0x10] sm:$0xff]
        %v302 = vld [vmem:[%s2] sm:$0xff]
        %v303 = vld [vmem:[%s2 + $0x8] sm:$0xff]
        %v304 = vld [vmem:[%s2 + $0x10] sm:$0xff]
        %306 = vset.pattern.permute.xlu0 0
        %307 = vperm.xlu0 %306, %v302
        %v308 = vpop.permute.xlu0 %307
        %311 = vset.pattern.permute.xlu0 0
        %312 = vperm.xlu0 %311, %v303
        %v313 = vpop.permute.xlu0 %312
        %316 = vset.pattern.permute.xlu0 0
        %317 = vperm.xlu0 %316, %v304
        %v318 = vpop.permute.xlu0 %317
        %v321 = vcombine.high %v295, %v295
        %vm322 = vcmask 31744
        %v324 = vsel %vm322, %v296, 0
        %v327 = vsel %vm322, %v297, 0
        %v330 = vsel %vm322, %v298, 0
        %vm332 = vcmask 1043456
        %v333 = vsel %vm332, %v295, 0
        %v335 = vsel %vm332, %v321, 0
        %337 = vmatprep.subr.mxu0 %v335
        %338 = vmatpush1.msra.mxu0 %v333
        %339 = vmatprep.subr.mxu0 0.0
        %340 = vmatpush1.msra.mxu0 0.0
        %341 = vmatprep.subr.mxu0 0.0
        %342 = vmatpush1.msra.mxu0 0.0
        %343 = vmatprep.subr.mxu0 0.0
        %344 = vmatpush1.msra.mxu0 0.0
        %345 = vmatprep.subr.mxu0 0.0
        %346 = vmatpush1.msra.mxu0 0.0
        %347 = vmatprep.subr.mxu0 0.0
        %348 = vmatpush1.msra.mxu0 0.0
        %349 = vmatprep.subr.mxu0 0.0
        %350 = vmatpush1.msra.mxu0 0.0
        %351 = vmatprep.subr.mxu0 0.0
        %352 = vmatpush1.msra.mxu0 0.0
        %353 = vmatprep.subr.mxu0 0.0
        %354 = vmatpush1.msra.mxu0 0.0
        %355 = vmatprep.subr.mxu0 0.0
        %356 = vmatpush1.msra.mxu0 0.0
        %357 = vmatprep.subr.mxu0 0.0
        %358 = vmatpush1.msra.mxu0 0.0
        %359 = vmatprep.subr.mxu0 0.0
        %360 = vmatpush1.msra.mxu0 0.0
        %361 = vmatprep.subr.mxu0 0.0
        %362 = vmatpush1.msra.mxu0 0.0
        %363 = vmatprep.subr.mxu0 0.0
        %364 = vmatpush1.msra.mxu0 0.0
        %365 = vmatprep.subr.mxu0 0.0
        %366 = vmatpush1.msra.mxu0 0.0
        %367 = vmatprep.subr.mxu0 0.0
        %368 = vmatpush1.msra.mxu0 0.0
        %369 = vmatprep.subr.mxu0 0.0
        %370 = vmatpush1.msra.mxu0 0.0
        %371 = vmatprep.subr.mxu0 0.0
        %372 = vmatpush1.msra.mxu0 0.0
        %373 = vmatprep.subr.mxu0 0.0
        %374 = vmatpush1.msra.mxu0 0.0
        %375 = vmatprep.subr.mxu0 0.0
        %376 = vmatpush1.msra.mxu0 0.0
        %377 = vmatprep.subr.mxu0 0.0
        %378 = vmatpush1.msra.mxu0 0.0
        %379 = vmatprep.subr.mxu0 0.0
        %380 = vmatpush1.msra.mxu0 0.0
        %381 = vmatprep.subr.mxu0 0.0
        %382 = vmatpush1.msra.mxu0 0.0
        %383 = vmatprep.subr.mxu0 0.0
        %384 = vmatpush1.msra.mxu0 0.0
        %385 = vmatprep.subr.mxu0 0.0
        %386 = vmatpush1.msra.mxu0 0.0
        %387 = vmatprep.subr.mxu0 0.0
        %388 = vmatpush1.msra.mxu0 0.0
        %389 = vmatprep.subr.mxu0 0.0
        %390 = vmatpush1.msra.mxu0 0.0
        %391 = vmatprep.subr.mxu0 0.0
        %392 = vmatpush1.msra.mxu0 0.0
        %393 = vmatprep.subr.mxu0 0.0
        %394 = vmatpush1.msra.mxu0 0.0
        %395 = vmatprep.subr.mxu0 0.0
        %396 = vmatpush1.msra.mxu0 0.0
        %397 = vmatprep.subr.mxu0 0.0
        %398 = vmatpush1.msra.mxu0 0.0
        %399 = vmatprep.subr.mxu0 0.0
        %400 = vmatpush1.msra.mxu0 0.0
        %401 = vmatprep.mubr.f32.mxu0 0.0
        %402 = vmatmul.mubr.f32.gmra.mrb[0].mxu0 %v324
        %v403 = vpop.f32.mrb[0].mxu0
        %v404 = vadd.f32 %v308, %v403
        %v405 = vpop.f32.mrb[0].mxu0
        %v406 = vadd.f32 %v308, %v405
        %407 = vmatprep.mubr.f32.mxu0 0.0
        %408 = vmatmul.mubr.f32.gmra.mrb[0].mxu0 %v327
        %v409 = vpop.f32.mrb[0].mxu0
        %v410 = vadd.f32 %v313, %v409
        %v411 = vpop.f32.mrb[0].mxu0
        %v412 = vadd.f32 %v313, %v411
        %413 = vmatprep.mubr.f32.mxu0 0.0
        %414 = vmatmul.mubr.f32.gmra.mrb[0].mxu0 %v330
        %v415 = vpop.f32.mrb[0].mxu0
        %v416 = vadd.f32 %v318, %v415
        %v417 = vpop.f32.mrb[0].mxu0
        %v418 = vadd.f32 %v318, %v417
        %419 = vdwg.mxu0
        %420 = vst [vmem:[%s275] sm:$0xff] %v404
        %421 = vst [vmem:[%s275 + $0x8] sm:$0xff] %v406
        %422 = vst [vmem:[%s275 + $0x10] sm:$0xff] %v410
        %423 = vst [vmem:[%s275 + $0x18] sm:$0xff] %v412
        %424 = vst [vmem:[%s275 + $0x20] sm:$0xff] %v416
        %425 = vst [vmem:[%s275 + $0x28] sm:$0xff] %v418
        %v426 = vld [vmem:[%s4] sm:$0xff]
        %v427 = vld [vmem:[%s4 + $0x8] sm:$0xff]
        %v428 = vld [vmem:[%s4 + $0x10] sm:$0xff]
        %430 = vset.pattern.permute.xlu0 0
        %431 = vperm.xlu0 %430, %v426
        %v432 = vpop.permute.xlu0 %431
        %435 = vset.pattern.permute.xlu0 0
        %436 = vperm.xlu0 %435, %v427
        %v437 = vpop.permute.xlu0 %436
        %440 = vset.pattern.permute.xlu0 0
        %441 = vperm.xlu0 %440, %v428
        %v442 = vpop.permute.xlu0 %441
        %v445 = vsel %vm322, %v299, 0
        %v448 = vsel %vm322, %v300, 0
        %v451 = vsel %vm322, %v301, 0
        %453 = vmatprep.subr.mxu0 %v335
        %454 = vmatpush1.msra.mxu0 %v333
        %455 = vmatprep.subr.mxu0 0.0
        %456 = vmatpush1.msra.mxu0 0.0
        %457 = vmatprep.subr.mxu0 0.0
        %458 = vmatpush1.msra.mxu0 0.0
        %459 = vmatprep.subr.mxu0 0.0
        %460 = vmatpush1.msra.mxu0 0.0
        %461 = vmatprep.subr.mxu0 0.0
        %462 = vmatpush1.msra.mxu0 0.0
        %463 = vmatprep.subr.mxu0 0.0
        %464 = vmatpush1.msra.mxu0 0.0
        %465 = vmatprep.subr.mxu0 0.0
        %466 = vmatpush1.msra.mxu0 0.0
        %467 = vmatprep.subr.mxu0 0.0
        %468 = vmatpush1.msra.mxu0 0.0
        %469 = vmatprep.subr.mxu0 0.0
        %470 = vmatpush1.msra.mxu0 0.0
        %471 = vmatprep.subr.mxu0 0.0
        %472 = vmatpush1.msra.mxu0 0.0
        %473 = vmatprep.subr.mxu0 0.0
        %474 = vmatpush1.msra.mxu0 0.0
        %475 = vmatprep.subr.mxu0 0.0
        %476 = vmatpush1.msra.mxu0 0.0
        %477 = vmatprep.subr.mxu0 0.0
        %478 = vmatpush1.msra.mxu0 0.0
        %479 = vmatprep.subr.mxu0 0.0
        %480 = vmatpush1.msra.mxu0 0.0
        %481 = vmatprep.subr.mxu0 0.0
        %482 = vmatpush1.msra.mxu0 0.0
        %483 = vmatprep.subr.mxu0 0.0
        %484 = vmatpush1.msra.mxu0 0.0
        %485 = vmatprep.subr.mxu0 0.0
        %486 = vmatpush1.msra.mxu0 0.0
        %487 = vmatprep.subr.mxu0 0.0
        %488 = vmatpush1.msra.mxu0 0.0
        %489 = vmatprep.subr.mxu0 0.0
        %490 = vmatpush1.msra.mxu0 0.0
        %491 = vmatprep.subr.mxu0 0.0
        %492 = vmatpush1.msra.mxu0 0.0
        %493 = vmatprep.subr.mxu0 0.0
        %494 = vmatpush1.msra.mxu0 0.0
        %495 = vmatprep.subr.mxu0 0.0
        %496 = vmatpush1.msra.mxu0 0.0
        %497 = vmatprep.subr.mxu0 0.0
        %498 = vmatpush1.msra.mxu0 0.0
        %499 = vmatprep.subr.mxu0 0.0
        %500 = vmatpush1.msra.mxu0 0.0
        %501 = vmatprep.subr.mxu0 0.0
        %502 = vmatpush1.msra.mxu0 0.0
        %503 = vmatprep.subr.mxu0 0.0
        %504 = vmatpush1.msra.mxu0 0.0
        %505 = vmatprep.subr.mxu0 0.0
        %506 = vmatpush1.msra.mxu0 0.0
        %507 = vmatprep.subr.mxu0 0.0
        %508 = vmatpush1.msra.mxu0 0.0
        %509 = vmatprep.subr.mxu0 0.0
        %510 = vmatpush1.msra.mxu0 0.0
        %511 = vmatprep.subr.mxu0 0.0
        %512 = vmatpush1.msra.mxu0 0.0
        %513 = vmatprep.subr.mxu0 0.0
        %514 = vmatpush1.msra.mxu0 0.0
        %515 = vmatprep.subr.mxu0 0.0
        %516 = vmatpush1.msra.mxu0 0.0
        %517 = vmatprep.mubr.f32.mxu0 0.0
        %518 = vmatmul.mubr.f32.gmra.mrb[0].mxu0 %v445
        %v519 = vpop.f32.mrb[0].mxu0
        %v520 = vadd.f32 %v432, %v519
        %v521 = vpop.f32.mrb[0].mxu0
        %v522 = vadd.f32 %v432, %v521
        %523 = vmatprep.mubr.f32.mxu0 0.0
        %524 = vmatmul.mubr.f32.gmra.mrb[0].mxu0 %v448
        %v525 = vpop.f32.mrb[0].mxu0
        %v526 = vadd.f32 %v437, %v525
        %v527 = vpop.f32.mrb[0].mxu0
        %v528 = vadd.f32 %v437, %v527
        %529 = vmatprep.mubr.f32.mxu0 0.0
        %530 = vmatmul.mubr.f32.gmra.mrb[0].mxu0 %v451
        %v531 = vpop.f32.mrb[0].mxu0
        %v532 = vadd.f32 %v442, %v531
        %v533 = vpop.f32.mrb[0].mxu0
        %v534 = vadd.f32 %v442, %v533
        %535 = vdwg.mxu0
        %536 = vst [vmem:[%s282] sm:$0xff] %v520
        %537 = vst [vmem:[%s282 + $0x8] sm:$0xff] %v522
        %538 = vst [vmem:[%s282 + $0x10] sm:$0xff] %v526
        %539 = vst [vmem:[%s282 + $0x18] sm:$0xff] %v528
        %540 = vst [vmem:[%s282 + $0x20] sm:$0xff] %v532
        %541 = vst [vmem:[%s282 + $0x28] sm:$0xff] %v534
        %s542 = sand.u32 %s158, 1
        %s543 = scalar_lea.sflag [#allocation3], %s542
        %s544 = sand.u32 %s158, 1
        %s545 = smul.addr %s544, 48
        %s546 = scalar_lea.vmem [#allocation2], %s545
        %s547 = sand.u32 %s186, 1
        %s548 = scalar_lea.sflag [#allocation5], %s547
        %s549 = sand.u32 %s186, 1
        %s550 = smul.addr %s549, 48
        %s551 = scalar_lea.vmem [#allocation4], %s550
        // Predicated region
        $region41: #{tpu_custom_call.1} parent=39 // pred_check
          %p552 = pneg %p168
        $region42: #{tpu_custom_call.1} parent=39 // pred_check_branch
          %554 = sbr.rel (%p552) target = $region44
        $region43: #{tpu_custom_call.1} parent=39 // pred_region
          %s555 = smul.u32 2, %s29
          %s557 = ssub.s32 768, 768
          %558 = vsyncadd %s543, %s557
          %s559 = smul.addr %s28, 6
          %s560 = sadd.s32 %s555, %s559
          %s561 = smul.addr %s560, 128
          %s562 = scalar_lea.hbm %s5, %s561
          %s563 = sshll.u32 %s546, 4
          %s564 = int_to_ptr.vmem [resolvable:$true] %s563
          %569 = dma.vmem_to_hbm [thread:$0]  %s564, 768, %s562, %s543, 256, 256, 16
        $region44: #{tpu_custom_call.1} parent=39 // pred_fallthru
          _
        // Predicated region
        $region45: #{tpu_custom_call.1} parent=39 // pred_check
          %p570 = pneg %p196
        $region46: #{tpu_custom_call.1} parent=39 // pred_check_branch
          %572 = sbr.rel (%p570) target = $region48
        $region47: #{tpu_custom_call.1} parent=39 // pred_region
          %s573 = smul.u32 2, %s29
          %s575 = ssub.s32 768, 768
          %576 = vsyncadd %s548, %s575
          %s577 = smul.addr %s28, 6
          %s578 = sadd.s32 %s573, %s577
          %s579 = smul.addr %s578, 128
          %s580 = scalar_lea.hbm %s6, %s579
          %s581 = sshll.u32 %s551, 4
          %s582 = int_to_ptr.vmem [resolvable:$true] %s581
          %587 = dma.vmem_to_hbm [thread:$0]  %s582, 768, %s580, %s548, 256, 256, 16
        $region48: #{tpu_custom_call.1} parent=39 // pred_fallthru
          _
      $region40: #{tpu_custom_call.1} parent=5 // pred_fallthru
        _
      %p588 = scmp.le.s32.totalorder 2, %s19
      // Predicated region
      $region49: #{tpu_custom_call.1} parent=5 // pred_check
        %p589 = pneg %p588
      $region50: #{tpu_custom_call.1} parent=5 // pred_check_branch
        %591 = sbr.rel (%p589) target = $region52
      $region51: #{tpu_custom_call.1} parent=5 // pred_region
        %s592 = ssub.s32 %s19, 2
        // Predicated region
        $region53: #{tpu_custom_call.1} parent=51 // pred_check
          %p593 = pneg %p174
        $region54: #{tpu_custom_call.1} parent=51 // pred_check_branch
          %595 = sbr.rel (%p593) target = $region56
        $region55: #{tpu_custom_call.1} parent=51 // pred_region
          %s596 = sand.u32 %s159, 1
          %s597 = scalar_lea.sflag [#allocation3], %s596
          %s598 = sand.u32 %s159, 1
          %s599 = smul.addr %s598, 48
          %s600 = scalar_lea.vmem [#allocation2], %s599
          %601 = dma.done %s597, 768
        $region56: #{tpu_custom_call.1} parent=51 // pred_fallthru
          _
        // Predicated region
        $region57: #{tpu_custom_call.1} parent=51 // pred_check
          %p602 = pneg %p202
        $region58: #{tpu_custom_call.1} parent=51 // pred_check_branch
          %604 = sbr.rel (%p602) target = $region60
        $region59: #{tpu_custom_call.1} parent=51 // pred_region
          %s605 = sand.u32 %s187, 1
          %s606 = scalar_lea.sflag [#allocation5], %s605
          %s607 = sand.u32 %s187, 1
          %s608 = smul.addr %s607, 48
          %s609 = scalar_lea.vmem [#allocation4], %s608
          %610 = dma.done %s606, 768
        $region60: #{tpu_custom_call.1} parent=51 // pred_fallthru
          _
      $region52: #{tpu_custom_call.1} parent=5 // pred_fallthru
        _
    $region6: #{tpu_custom_call.1} parent=1 // loop_footer
      %s23 = sadd.s32 1, %s19
    $region7: #{tpu_custom_call.1} parent=1 // loop_footer_branch
      %18 = sbr.rel target = $region3
    $region8: #{tpu_custom_call.1} parent=1 // loop_exit
      _
    %611 = vsyncpa [#allocation3], 1
    %s612 = scalar_lea.sflag [#allocation3], 1
    %613 = vsyncpa %s612, 1
    %614 = vsyncpa [#allocation5], 1
    %s615 = scalar_lea.sflag [#allocation5], 1
    %616 = vsyncpa %s615, 1

</llo_original>
